<compile_context>
chip_gen: v7x
topology: tpu7x:2x2x1
jax: 0.10.0
libtpu: 0.0.40
codegen_flags: <defaults>
</compile_context>

<pallas_src>
import jax
import jax.numpy as jnp
from jax.experimental import pallas as pl
from jax.experimental.pallas import tpu as pltpu


_TARGET_BLOCK_BYTES = 2 * 1024 * 1024   # ~2 MiB x-slab per grid step (near HBM roofline)
_VMEM_LIMIT_BYTES = 40 * 1024 * 1024    # fits v5e/v6e (128 MiB) and v7x (64 MiB) VMEM
_MIN_PALLAS_ELEMS = 64 * 1024           # below this, fused XLA beats a custom call


def se_kernel(x_ref, w1t_ref, b1_ref, w2t_ref, b2_ref, o_ref):
    # x_ref block: (BB, C, T) -- BB batch rows per grid step.
    x = x_ref[...]                                              # native dtype slab

    # --- squeeze: mean over the temporal (lane) axis, accumulated in f32 ---
    squeeze = jnp.mean(x.astype(jnp.float32), axis=2)           # (BB, C)

    # --- excitation MLP (tiny: BB x C values, MXU is otherwise idle) ---
    h = jnp.dot(squeeze, w1t_ref[...],
                preferred_element_type=jnp.float32) + b1_ref[...]     # (BB, Cr)
    h = jnp.maximum(h, 0.0)                                     # ReLU
    s = jnp.dot(h, w2t_ref[...],
                preferred_element_type=jnp.float32) + b2_ref[...]     # (BB, C)
    s = jax.nn.sigmoid(s)

    # --- channel-wise rescale (broadcast over T) ---
    # The (BB, C) -> (BB, C, 1) broadcast is an O(BB*C) relayout per step,
    # negligible relative to the (BB, C, T) streaming multiply/store.
    o_ref[...] = (x * s.astype(x.dtype)[:, :, None]).astype(o_ref.dtype)


def _reference_se(x, w1, b1, w2, b2):
    """Pure-JAX reference mirroring the PyTorch forward."""
    squeeze = jnp.mean(x, axis=2)                               # (B, C)
    h = jnp.maximum(squeeze @ w1.T + b1, 0.0)                   # (B, Cr)
    s = jax.nn.sigmoid(h @ w2.T + b2)                           # (B, C)
    return x * s[:, :, None]


def channel_se_layer(x, w1, b1, w2, b2, *, use_pallas=None):
    """
    x : (B, C, T)
    w1: (Cr, C), b1: (Cr,)   -- PyTorch Linear convention (out_features, in_features)
    w2: (C, Cr), b2: (C,)
    """
    B, C, T = x.shape
    Cr = w1.shape[0]

    # For tiny problems the custom call is pure launch overhead; let XLA fuse.
    if use_pallas is None:
        use_pallas = (B * C * T) >= _MIN_PALLAS_ELEMS
    if not use_pallas:
        return _reference_se(x, w1, b1, w2, b2)

    # --- pick the batch block so one x-slab is ~_TARGET_BLOCK_BYTES ---
    itemsize = jnp.dtype(x.dtype).itemsize
    row_bytes = C * T * itemsize
    bb = int(max(1, min(B, _TARGET_BLOCK_BYTES // max(1, row_bytes))))
    if bb >= B and B >= 2:
        # Keep >= 2 grid steps so v7x megacore can shard the parallel batch axis.
        bb = pl.cdiv(B, 2)
    grid = (pl.cdiv(B, bb),)     # boundary-block rows are masked on write

    # Pre-transpose weights (wrapper glue) so kernel matmuls are row-major.
    w1t = jnp.transpose(w1)            # (C, Cr)
    w2t = jnp.transpose(w2)            # (Cr, C)
    b1_2d = b1.reshape(1, Cr)
    b2_2d = b2.reshape(1, C)

    param_bytes = (w1t.size + w2t.size + b1_2d.size + b2_2d.size) * jnp.dtype(w1.dtype).itemsize
    cost = pl.CostEstimate(
        flops=int(2 * B * C * T            # temporal mean adds + rescale multiply
                  + 2 * 2 * B * C * Cr),   # two tiny excitation matmuls
        transcendentals=int(B * C),        # sigmoid
        bytes_accessed=int(2 * B * C * T * itemsize + param_bytes),
    )

    return pl.pallas_call(
        se_kernel,
        out_shape=jax.ShapeDtypeStruct((B, C, T), x.dtype),
        grid_spec=pltpu.PrefetchScalarGridSpec(
            num_scalar_prefetch=0,
            grid=grid,
            in_specs=[
                pl.BlockSpec((bb, C, T), lambda i: (i, 0, 0)),   # x (batch-blocked)
                pl.BlockSpec((C, Cr), lambda i: (0, 0)),         # w1t (resident)
                pl.BlockSpec((1, Cr), lambda i: (0, 0)),         # b1
                pl.BlockSpec((Cr, C), lambda i: (0, 0)),         # w2t
                pl.BlockSpec((1, C), lambda i: (0, 0)),          # b2
            ],
            out_specs=pl.BlockSpec((bb, C, T), lambda i: (i, 0, 0)),
        ),
        compiler_params=pltpu.CompilerParams(
            dimension_semantics=("parallel",),
            vmem_limit_bytes=_VMEM_LIMIT_BYTES),
        cost_estimate=cost,
    )(x, w1t, b1_2d, w2t, b2_2d)


if __name__ == "__main__":
    key = jax.random.PRNGKey(0)

    def make_params(k, C, Cr):
        kw1, kb1, kw2, kb2 = jax.random.split(k, 4)
        w1 = jax.random.uniform(kw1, (Cr, C), minval=-0.5, maxval=0.5, dtype=jnp.float32)
        b1 = jax.random.uniform(kb1, (Cr,), minval=-0.5, maxval=0.5, dtype=jnp.float32)
        w2 = jax.random.uniform(kw2, (C, Cr), minval=-0.5, maxval=0.5, dtype=jnp.float32)
        b2 = jax.random.uniform(kb2, (C,), minval=-0.5, maxval=0.5, dtype=jnp.float32)
        return w1, b1, w2, b2

    k1, k2, kx1, kx2 = jax.random.split(key, 4)

    # Case 1: module config num_channels=4, reduction_ratio=2  ->  (B, C, T) = (2, 4, 16).
    B, C, T = 2, 4, 16
    Cr = C // 2
    x = jax.random.normal(kx1, (B, C, T), dtype=jnp.float32)
    w1, b1, w2, b2 = make_params(k1, C, Cr)
    out = jax.block_until_ready(channel_se_layer(x, w1, b1, w2, b2, use_pallas=True))
    ref = _reference_se(x, w1, b1, w2, b2)
    assert out.shape == (B, C, T)
    assert jnp.allclose(out, ref, atol=1e-5, rtol=1e-5), "case1 mismatch vs reference"

    # Case 2: exercises batch blocking (BB > 1) and a non-divisible boundary block.
    B, C, T = 9, 8, 256
    Cr = C // 2
    x = jax.random.normal(kx2, (B, C, T), dtype=jnp.float32)
    w1, b1, w2, b2 = make_params(k2, C, Cr)
    out = jax.block_until_ready(channel_se_layer(x, w1, b1, w2, b2, use_pallas=True))
    ref = _reference_se(x, w1, b1, w2, b2)
    assert out.shape == (B, C, T)
    assert jnp.allclose(out, ref, atol=1e-5, rtol=1e-5), "case2 mismatch vs reference"

    print("KERNEL_OK")
</pallas_src>

<mosaic_0001>
module attributes {stable_mosaic.version = 11 : i64} {
  func.func @se_kernel(%arg0: i32, %arg1: memref<1x4x16xf32, #tpu.memory_space<vmem>>, %arg2: memref<4x2xf32, #tpu.memory_space<vmem>>, %arg3: memref<1x2xf32, #tpu.memory_space<vmem>>, %arg4: memref<2x4xf32, #tpu.memory_space<vmem>>, %arg5: memref<1x4xf32, #tpu.memory_space<vmem>>, %arg6: memref<1x4x16xf32, #tpu.memory_space<vmem>>) attributes {dimension_semantics = [#tpu.dimension_semantics<parallel>], iteration_bounds = array<i64: 2>, scalar_prefetch = 0 : i64, scratch_operands = 0 : i64, tpu.core_type = #tpu.core_type<tc>, window_params = [{transform_indices = @transform_0, window_bounds = array<i64: 1, 4, 16>}, {pipeline_mode = #tpu.pipeline_mode<synchronous>, transform_indices = @transform_1, window_bounds = array<i64: 4, 2>}, {pipeline_mode = #tpu.pipeline_mode<synchronous>, transform_indices = @transform_2, window_bounds = array<i64: 1, 2>}, {pipeline_mode = #tpu.pipeline_mode<synchronous>, transform_indices = @transform_3, window_bounds = array<i64: 2, 4>}, {pipeline_mode = #tpu.pipeline_mode<synchronous>, transform_indices = @transform_4, window_bounds = array<i64: 1, 4>}, {transform_indices = @transform_5, window_bounds = array<i64: 1, 4, 16>}]} {
    %c0 = arith.constant 0 : index
    %c0_0 = arith.constant 0 : index
    %c0_1 = arith.constant 0 : index
    %0 = vector.load %arg1[%c0, %c0_0, %c0_1] : memref<1x4x16xf32, #tpu.memory_space<vmem>>, vector<1x4x16xf32>
    %cst = arith.constant dense<0.000000e+00> : vector<1x4xf32>
    %1 = vector.multi_reduction <add>, %0, %cst [2] : vector<1x4x16xf32> to vector<1x4xf32>
    %cst_2 = arith.constant 1.600000e+01 : f32
    %2 = vector.broadcast %cst_2 : f32 to vector<1x4xf32>
    %3 = arith.divf %1, %2 : vector<1x4xf32>
    %c0_3 = arith.constant 0 : index
    %c0_4 = arith.constant 0 : index
    %4 = vector.load %arg2[%c0_3, %c0_4] : memref<4x2xf32, #tpu.memory_space<vmem>>, vector<4x2xf32>
    %cst_5 = arith.constant dense<0.000000e+00> : vector<1x2xf32>
    %5 = tpu.matmul %3, %4, %cst_5 {dimension_numbers = #tpu.dot_dimension_numbers<[1], [0], [0], [1], [0, 0, 1, 1], [], []>} : vector<1x4xf32>, vector<4x2xf32>, vector<1x2xf32> -> vector<1x2xf32>
    %c0_6 = arith.constant 0 : index
    %c0_7 = arith.constant 0 : index
    %6 = vector.load %arg3[%c0_6, %c0_7] : memref<1x2xf32, #tpu.memory_space<vmem>>, vector<1x2xf32>
    %7 = arith.addf %5, %6 : vector<1x2xf32>
    %cst_8 = arith.constant 0.000000e+00 : f32
    %8 = vector.broadcast %cst_8 : f32 to vector<1x2xf32>
    %9 = arith.maximumf %7, %8 : vector<1x2xf32>
    %c0_9 = arith.constant 0 : index
    %c0_10 = arith.constant 0 : index
    %10 = vector.load %arg4[%c0_9, %c0_10] : memref<2x4xf32, #tpu.memory_space<vmem>>, vector<2x4xf32>
    %cst_11 = arith.constant dense<0.000000e+00> : vector<1x4xf32>
    %11 = tpu.matmul %9, %10, %cst_11 {dimension_numbers = #tpu.dot_dimension_numbers<[1], [0], [0], [1], [0, 0, 1, 1], [], []>} : vector<1x2xf32>, vector<2x4xf32>, vector<1x4xf32> -> vector<1x4xf32>
    %c0_12 = arith.constant 0 : index
    %c0_13 = arith.constant 0 : index
    %12 = vector.load %arg5[%c0_12, %c0_13] : memref<1x4xf32, #tpu.memory_space<vmem>>, vector<1x4xf32>
    %13 = arith.addf %11, %12 : vector<1x4xf32>
    %14 = arith.negf %13 : vector<1x4xf32>
    %15 = math.exp %14 : vector<1x4xf32>
    %cst_14 = arith.constant 1.000000e+00 : f32
    %16 = vector.broadcast %cst_14 : f32 to vector<1x4xf32>
    %17 = arith.addf %16, %15 : vector<1x4xf32>
    %18 = arith.divf %16, %17 : vector<1x4xf32>
    %19 = vector.shape_cast %18 : vector<1x4xf32> to vector<1x4x1xf32>
    %20 = vector.broadcast %19 : vector<1x4x1xf32> to vector<1x4x16xf32>
    %21 = arith.mulf %0, %20 : vector<1x4x16xf32>
    %c0_15 = arith.constant 0 : index
    %c0_16 = arith.constant 0 : index
    %c0_17 = arith.constant 0 : index
    %22 = vector.load %arg6[%c0_15, %c0_16, %c0_17] : memref<1x4x16xf32, #tpu.memory_space<vmem>>, vector<1x4x16xf32>
    tpu.vector_store %arg6[%c0_15, %c0_16, %c0_17], %21 {strides = array<i32>} : memref<1x4x16xf32, #tpu.memory_space<vmem>>, vector<1x4x16xf32>,
    return
  }
  func.func @transform_0(%arg0: i32) -> (i32, i32, i32) {
    %c0_i32 = arith.constant 0 : i32
    %c0_i32_0 = arith.constant 0 : i32
    %c0_i32_1 = arith.constant 0 : i32
    return %arg0, %c0_i32, %c0_i32_0 : i32, i32, i32
  }
  func.func @transform_1(%arg0: i32) -> (i32, i32) {
    %c0_i32 = arith.constant 0 : i32
    %c0_i32_0 = arith.constant 0 : i32
    %c0_i32_1 = arith.constant 0 : i32
    return %c0_i32, %c0_i32_0 : i32, i32
  }
  func.func @transform_2(%arg0: i32) -> (i32, i32) {
    %c0_i32 = arith.constant 0 : i32
    %c0_i32_0 = arith.constant 0 : i32
    %c0_i32_1 = arith.constant 0 : i32
    return %c0_i32, %c0_i32_0 : i32, i32
  }
  func.func @transform_3(%arg0: i32) -> (i32, i32) {
    %c0_i32 = arith.constant 0 : i32
    %c0_i32_0 = arith.constant 0 : i32
    %c0_i32_1 = arith.constant 0 : i32
    return %c0_i32, %c0_i32_0 : i32, i32
  }
  func.func @transform_4(%arg0: i32) -> (i32, i32) {
    %c0_i32 = arith.constant 0 : i32
    %c0_i32_0 = arith.constant 0 : i32
    %c0_i32_1 = arith.constant 0 : i32
    return %c0_i32, %c0_i32_0 : i32, i32
  }
  func.func @transform_5(%arg0: i32) -> (i32, i32, i32) {
    %c0_i32 = arith.constant 0 : i32
    %c0_i32_0 = arith.constant 0 : i32
    %c0_i32_1 = arith.constant 0 : i32
    return %arg0, %c0_i32, %c0_i32_0 : i32, i32, i32
  }
}

</mosaic_0001>

<llo_original>
// kernel: tpu_custom_call.1
$region0: #{tpu_custom_call.1}
  #allocation0 [shape = 'u32[]', space=smem, size = 0x4, offset = 0x4, fixed_abs, tag = 'smem constant byte address 0x4 - core index']
  #allocation1 [shape = 'u32[144,128]{1,0:T(1,128)}', space=vmem, size = 0x12000, scoped, tag = 'internal scratch']
  %s0 = inlined_call_operand.hbm [shape: f32[2,4,16], index: 0, kind: input, shape index: {}]
  %s1 = inlined_call_operand.vmem [shape: f32[4,2], index: 1, kind: input, shape index: {}]
  %s2 = inlined_call_operand.vmem [shape: f32[1,2], index: 2, kind: input, shape index: {}]
  %s3 = inlined_call_operand.vmem [shape: f32[2,4], index: 3, kind: input, shape index: {}]
  %s4 = inlined_call_operand.vmem [shape: f32[1,4], index: 4, kind: input, shape index: {}]
  %s5 = inlined_call_operand.hbm [shape: f32[2,4,16], index: 5, kind: output, shape index: {}]
  %s6 = sld [smem:[#allocation0]]
  $region57: #{tpu_custom_call.1} parent=0
    _
  %s8 = ssub.s32 1, %s6
  %s9 = scalar_select 0, %s8, %s6
  $region1: #{tpu_custom_call.1} parent=0
    #allocation2 [shape = 'u8[4096]{0}', space=vmem, size = 0x1000, scoped, tag = 'input window, operand 0']
    #allocation3 [shape = 's32[2]{0}', space=sflag, size = 0x8, scoped, tag = 'scoped memory for tpu_custom_call.1']
    #allocation4 [shape = 's32[2]{0}', space=sflag, size = 0x8, scoped, tag = 'scoped memory for tpu_custom_call.1']
    #allocation5 [shape = 'u8[4096]{0}', space=vmem, size = 0x1000, scoped, tag = 'output window, operand 0']
    %10 = vsyncpa [#allocation3], 0
    %s11 = scalar_lea.sflag [#allocation3], 1
    %12 = vsyncpa %s11, 0
    %13 = vsyncpa [#allocation4], 0
    %s14 = scalar_lea.sflag [#allocation4], 1
    %15 = vsyncpa %s14, 0
    loop: start=0, step=1, limit=4
    $region2: #{tpu_custom_call.1} parent=1 // loop_pre_header
      _
    $region3: #{tpu_custom_call.1} parent=1 // loop_header
      %s17 = sphi 0, %s21
      %p18 = scmp.ge.s32.totalorder %s17, 4
      %s27 = sphi 0, %s29
      %s30 = sphi 0, %s27
      %s31 = sphi 0, %s30
      %s47 = sphi 0, %s31
      %s51 = sphi 0, %s51
      %s53 = sphi 0, %s51
      %s54 = sphi 0, %s53
      %s68 = sphi 0, %s54
      %s72 = sphi 0, %s72
      %s74 = sphi 0, %s72
      %s75 = sphi 0, %s74
      %s89 = sphi 0, %s75
      %s93 = sphi 0, %s93
      %s95 = sphi 0, %s93
      %s96 = sphi 0, %s95
      %s110 = sphi 0, %s96
      %s114 = sphi 0, %s114
      %s116 = sphi 0, %s114
      %s117 = sphi 0, %s116
      %s131 = sphi 0, %s117
      %s137 = sphi 0, %s139
      %s140 = sphi 0, %s137
      %s141 = sphi 0, %s140
      %s157 = sphi 0, %s141
    $region4: #{tpu_custom_call.1} parent=1 // loop_header_branch
      %20 = sbr.rel (%p18) target = $region8
    $region5: #{tpu_custom_call.1} parent=1 // loop_body
      %s22 = ssub.s32 %s17, 1
      %s23 = ssub.s32 %s17, 2
      %s24 = sadd.s32 %s17, 1
      %s25 = ssub.s32 %s17, %s24
      %p26 = scmp.eq.s32.totalorder %s25, 0
      %s28 = sadd.s32 %s27, 1
      %s29 = scalar_select %p26, %s27, %s28
      %p32 = pneg %p26
      %p33 = scmp.eq.s32.totalorder %s17, 1
      %p34 = por %p32, %p33
      %p35 = scmp.ne.s32.totalorder %s27, %s30
      %p36 = scmp.eq.s32.totalorder %s17, 0
      %p37 = por %p35, %p36
      %p38 = scmp.ne.s32.totalorder %s27, %s30
      %p39 = scmp.eq.s32.totalorder %s22, 1
      %p40 = por %p38, %p39
      %p41 = scmp.ne.s32.totalorder %s30, %s31
      %p42 = scmp.eq.s32.totalorder %s22, 0
      %p43 = por %p41, %p42
      %p44 = scmp.ne.s32.totalorder %s30, %s31
      %p45 = scmp.eq.s32.totalorder %s23, 1
      %p46 = por %p44, %p45
      %p48 = scmp.ne.s32.totalorder %s31, %s47
      %p49 = scmp.eq.s32.totalorder %s23, 0
      %p50 = por %p48, %p49
      %s52 = sadd.s32 %s51, 1
      %p55 = scmp.eq.s32.totalorder %s17, 1
      %p56 = scmp.ne.s32.totalorder %s51, %s53
      %p57 = scmp.eq.s32.totalorder %s17, 0
      %p58 = por %p56, %p57
      %p59 = scmp.ne.s32.totalorder %s51, %s53
      %p60 = scmp.eq.s32.totalorder %s22, 1
      %p61 = por %p59, %p60
      %p62 = scmp.ne.s32.totalorder %s53, %s54
      %p63 = scmp.eq.s32.totalorder %s22, 0
      %p64 = por %p62, %p63
      %p65 = scmp.ne.s32.totalorder %s53, %s54
      %p66 = scmp.eq.s32.totalorder %s23, 1
      %p67 = por %p65, %p66
      %p69 = scmp.ne.s32.totalorder %s54, %s68
      %p70 = scmp.eq.s32.totalorder %s23, 0
      %p71 = por %p69, %p70
      %s73 = sadd.s32 %s72, 1
      %p76 = scmp.eq.s32.totalorder %s17, 1
      %p77 = scmp.ne.s32.totalorder %s72, %s74
      %p78 = scmp.eq.s32.totalorder %s17, 0
      %p79 = por %p77, %p78
      %p80 = scmp.ne.s32.totalorder %s72, %s74
      %p81 = scmp.eq.s32.totalorder %s22, 1
      %p82 = por %p80, %p81
      %p83 = scmp.ne.s32.totalorder %s74, %s75
      %p84 = scmp.eq.s32.totalorder %s22, 0
      %p85 = por %p83, %p84
      %p86 = scmp.ne.s32.totalorder %s74, %s75
      %p87 = scmp.eq.s32.totalorder %s23, 1
      %p88 = por %p86, %p87
      %p90 = scmp.ne.s32.totalorder %s75, %s89
      %p91 = scmp.eq.s32.totalorder %s23, 0
      %p92 = por %p90, %p91
      %s94 = sadd.s32 %s93, 1
      %p97 = scmp.eq.s32.totalorder %s17, 1
      %p98 = scmp.ne.s32.totalorder %s93, %s95
      %p99 = scmp.eq.s32.totalorder %s17, 0
      %p100 = por %p98, %p99
      %p101 = scmp.ne.s32.totalorder %s93, %s95
      %p102 = scmp.eq.s32.totalorder %s22, 1
      %p103 = por %p101, %p102
      %p104 = scmp.ne.s32.totalorder %s95, %s96
      %p105 = scmp.eq.s32.totalorder %s22, 0
      %p106 = por %p104, %p105
      %p107 = scmp.ne.s32.totalorder %s95, %s96
      %p108 = scmp.eq.s32.totalorder %s23, 1
      %p109 = por %p107, %p108
      %p111 = scmp.ne.s32.totalorder %s96, %s110
      %p112 = scmp.eq.s32.totalorder %s23, 0
      %p113 = por %p111, %p112
      %s115 = sadd.s32 %s114, 1
      %p118 = scmp.eq.s32.totalorder %s17, 1
      %p119 = scmp.ne.s32.totalorder %s114, %s116
      %p120 = scmp.eq.s32.totalorder %s17, 0
      %p121 = por %p119, %p120
      %p122 = scmp.ne.s32.totalorder %s114, %s116
      %p123 = scmp.eq.s32.totalorder %s22, 1
      %p124 = por %p122, %p123
      %p125 = scmp.ne.s32.totalorder %s116, %s117
      %p126 = scmp.eq.s32.totalorder %s22, 0
      %p127 = por %p125, %p126
      %p128 = scmp.ne.s32.totalorder %s116, %s117
      %p129 = scmp.eq.s32.totalorder %s23, 1
      %p130 = por %p128, %p129
      %p132 = scmp.ne.s32.totalorder %s117, %s131
      %p133 = scmp.eq.s32.totalorder %s23, 0
      %p134 = por %p132, %p133
      %s135 = ssub.s32 %s17, %s24
      %p136 = scmp.eq.s32.totalorder %s135, 0
      %s138 = sadd.s32 %s137, 1
      %s139 = scalar_select %p136, %s137, %s138
      %p142 = pneg %p136
      %p143 = scmp.eq.s32.totalorder %s17, 1
      %p144 = por %p142, %p143
      %p145 = scmp.ne.s32.totalorder %s137, %s140
      %p146 = scmp.eq.s32.totalorder %s17, 0
      %p147 = por %p145, %p146
      %p148 = scmp.ne.s32.totalorder %s137, %s140
      %p149 = scmp.eq.s32.totalorder %s22, 1
      %p150 = por %p148, %p149
      %p151 = scmp.ne.s32.totalorder %s140, %s141
      %p152 = scmp.eq.s32.totalorder %s22, 0
      %p153 = por %p151, %p152
      %p154 = scmp.ne.s32.totalorder %s140, %s141
      %p155 = scmp.eq.s32.totalorder %s23, 1
      %p156 = por %p154, %p155
      %p158 = scmp.ne.s32.totalorder %s141, %s157
      %p159 = scmp.eq.s32.totalorder %s23, 0
      %p160 = por %p158, %p159
      %p161 = scmp.le.s32.totalorder 1, %s17
      %p162 = scmp.lt.s32.totalorder %s17, 3
      %p163 = pnand %p161, %p162
      %p164 = pneg %p163
      // Predicated region
      $region9: #{tpu_custom_call.1} parent=5 // pred_check
        _
      $region10: #{tpu_custom_call.1} parent=5 // pred_check_branch
        %166 = sbr.rel (%p163) target = $region12
      $region11: #{tpu_custom_call.1} parent=5 // pred_region
        %s167 = ssub.s32 %s17, 1
        // Predicated region
        $region13: #{tpu_custom_call.1} parent=11 // pred_check
          %p168 = pneg %p64
        $region14: #{tpu_custom_call.1} parent=11 // pred_check_branch
          %170 = sbr.rel (%p168) target = $region16
        $region15: #{tpu_custom_call.1} parent=11 // pred_region
          _
        $region16: #{tpu_custom_call.1} parent=11 // pred_fallthru
          _
        // Predicated region
        $region17: #{tpu_custom_call.1} parent=11 // pred_check
          %p171 = pneg %p85
        $region18: #{tpu_custom_call.1} parent=11 // pred_check_branch
          %173 = sbr.rel (%p171) target = $region20
        $region19: #{tpu_custom_call.1} parent=11 // pred_region
          _
        $region20: #{tpu_custom_call.1} parent=11 // pred_fallthru
          _
        // Predicated region
        $region21: #{tpu_custom_call.1} parent=11 // pred_check
          %p174 = pneg %p106
        $region22: #{tpu_custom_call.1} parent=11 // pred_check_branch
          %176 = sbr.rel (%p174) target = $region24
        $region23: #{tpu_custom_call.1} parent=11 // pred_region
          _
        $region24: #{tpu_custom_call.1} parent=11 // pred_fallthru
          _
        // Predicated region
        $region25: #{tpu_custom_call.1} parent=11 // pred_check
          %p177 = pneg %p127
        $region26: #{tpu_custom_call.1} parent=11 // pred_check_branch
          %179 = sbr.rel (%p177) target = $region28
        $region27: #{tpu_custom_call.1} parent=11 // pred_region
          _
        $region28: #{tpu_custom_call.1} parent=11 // pred_fallthru
          _
      $region12: #{tpu_custom_call.1} parent=5 // pred_fallthru
        _
      %p180 = scmp.lt.s32.totalorder %s17, 2
      // Predicated region
      $region29: #{tpu_custom_call.1} parent=5 // pred_check
        %p181 = pneg %p180
      $region30: #{tpu_custom_call.1} parent=5 // pred_check_branch
        %183 = sbr.rel (%p181) target = $region32
      $region31: #{tpu_custom_call.1} parent=5 // pred_region
        // Predicated region
        $region33: #{tpu_custom_call.1} parent=31 // pred_check
          %p184 = pneg %p37
        $region34: #{tpu_custom_call.1} parent=31 // pred_check_branch
          %186 = sbr.rel (%p184) target = $region36
        $region35: #{tpu_custom_call.1} parent=31 // pred_region
          %s187 = sand.u32 %s27, 1
          %s188 = scalar_lea.sflag [#allocation3], %s187
          %s189 = sand.u32 %s27, 1
          %s190 = smul.addr %s189, 4
          %s191 = scalar_lea.vmem [#allocation2], %s190
          %s193 = ssub.s32 64, 64
          %194 = vsyncadd %s188, %s193
          %s195 = smul.addr %s17, 64
          %s196 = scalar_lea.hbm %s0, %s195
          %s198 = sshll.u32 %s191, 4
          %s199 = int_to_ptr.vmem [resolvable:$true] %s198
          %201 = dma.hbm_to_vmem [thread:$0]  %s196, 64, %s199, %s188
        $region36: #{tpu_custom_call.1} parent=31 // pred_fallthru
          _
      $region32: #{tpu_custom_call.1} parent=5 // pred_fallthru
        _
      %p202 = scmp.le.s32.totalorder 1, %s17
      %p203 = scmp.lt.s32.totalorder %s17, 3
      %p204 = pnand %p202, %p203
      %p205 = pneg %p204
      // Predicated region
      $region37: #{tpu_custom_call.1} parent=5 // pred_check
        _
      $region38: #{tpu_custom_call.1} parent=5 // pred_check_branch
        %207 = sbr.rel (%p204) target = $region40
      $region39: #{tpu_custom_call.1} parent=5 // pred_region
        %s208 = ssub.s32 %s17, 1
        %s209 = sand.u32 %s30, 1
        %s210 = scalar_lea.sflag [#allocation3], %s209
        %s211 = sand.u32 %s30, 1
        %s212 = smul.addr %s211, 4
        %s213 = scalar_lea.vmem [#allocation2], %s212
        // Predicated region
        $region41: #{tpu_custom_call.1} parent=39 // pred_check
          %p214 = pneg %p43
        $region42: #{tpu_custom_call.1} parent=39 // pred_check_branch
          %216 = sbr.rel (%p214) target = $region44
        $region43: #{tpu_custom_call.1} parent=39 // pred_region
          %217 = dma.done %s210, 64
        $region44: #{tpu_custom_call.1} parent=39 // pred_fallthru
          _
        %s218 = sand.u32 %s30, 1
        %s219 = scalar_lea.sflag [#allocation3], %s218
        %s220 = sand.u32 %s30, 1
        %s221 = smul.addr %s220, 4
        %s222 = scalar_lea.vmem [#allocation2], %s221
        %p223 = pneg %p43
        %p224 = pneg %p40
        %p225 = pneg %p64
        %p226 = pneg %p61
        %p227 = pneg %p85
        %p228 = pneg %p82
        %p229 = pneg %p106
        %p230 = pneg %p103
        %p231 = pneg %p127
        %p232 = pneg %p124
        %p233 = pneg %p153
        %p234 = pneg %p150
        %s235 = sand.u32 %s140, 1
        %s236 = scalar_lea.sflag [#allocation4], %s235
        %s237 = sand.u32 %s140, 1
        %s238 = smul.addr %s237, 4
        %s239 = scalar_lea.vmem [#allocation5], %s238
        %v240 = vld [vmem:[%s213] sm:$0xf]
        %vm241 = vcmask 125952
        %v242 = vsel %vm241, %v240, 0.0
        %243 = vadd.xlane.f32.xlu0 %v242
        %v244 = vpop.xlane.xlu0 %243
        %v245 = vrcp.pop 16.0
        %v246 = vmul.f32 %v244, %v245
        %v247 = vld [vmem:[%s1] sm:$0xf]
        %v248 = vld [vmem:[%s2] sm:$0x1]
        %v250 = vlaneseq
        %v251 = vand.u32 %v250, 127
        %v252 = vlaneseq
        %v253 = vshrl.u32 %v252, 7
        %v254 = vsub.s32 %v251, %v253
        %v255 = vrot.slane %v246, %v254
        %vm256 = vcmask 31744
        %v257 = vsel %vm256, %v255, 0
        %vm259 = vcmask 1043456
        %v261 = vsel %vm259, %v247, 0
        %263 = vmatprep.subr.mxu0 0.0
        %264 = vmatpush1.msra.mxu0 %v261
        %265 = vmatprep.subr.mxu0 0.0
        %266 = vmatpush1.msra.mxu0 0.0
        %267 = vmatprep.subr.mxu0 0.0
        %268 = vmatpush1.msra.mxu0 0.0
        %269 = vmatprep.subr.mxu0 0.0
        %270 = vmatpush1.msra.mxu0 0.0
        %271 = vmatprep.subr.mxu0 0.0
        %272 = vmatpush1.msra.mxu0 0.0
        %273 = vmatprep.subr.mxu0 0.0
        %274 = vmatpush1.msra.mxu0 0.0
        %275 = vmatprep.subr.mxu0 0.0
        %276 = vmatpush1.msra.mxu0 0.0
        %277 = vmatprep.subr.mxu0 0.0
        %278 = vmatpush1.msra.mxu0 0.0
        %279 = vmatprep.subr.mxu0 0.0
        %280 = vmatpush1.msra.mxu0 0.0
        %281 = vmatprep.subr.mxu0 0.0
        %282 = vmatpush1.msra.mxu0 0.0
        %283 = vmatprep.subr.mxu0 0.0
        %284 = vmatpush1.msra.mxu0 0.0
        %285 = vmatprep.subr.mxu0 0.0
        %286 = vmatpush1.msra.mxu0 0.0
        %287 = vmatprep.subr.mxu0 0.0
        %288 = vmatpush1.msra.mxu0 0.0
        %289 = vmatprep.subr.mxu0 0.0
        %290 = vmatpush1.msra.mxu0 0.0
        %291 = vmatprep.subr.mxu0 0.0
        %292 = vmatpush1.msra.mxu0 0.0
        %293 = vmatprep.subr.mxu0 0.0
        %294 = vmatpush1.msra.mxu0 0.0
        %295 = vmatprep.subr.mxu0 0.0
        %296 = vmatpush1.msra.mxu0 0.0
        %297 = vmatprep.subr.mxu0 0.0
        %298 = vmatpush1.msra.mxu0 0.0
        %299 = vmatprep.subr.mxu0 0.0
        %300 = vmatpush1.msra.mxu0 0.0
        %301 = vmatprep.subr.mxu0 0.0
        %302 = vmatpush1.msra.mxu0 0.0
        %303 = vmatprep.subr.mxu0 0.0
        %304 = vmatpush1.msra.mxu0 0.0
        %305 = vmatprep.subr.mxu0 0.0
        %306 = vmatpush1.msra.mxu0 0.0
        %307 = vmatprep.subr.mxu0 0.0
        %308 = vmatpush1.msra.mxu0 0.0
        %309 = vmatprep.subr.mxu0 0.0
        %310 = vmatpush1.msra.mxu0 0.0
        %311 = vmatprep.subr.mxu0 0.0
        %312 = vmatpush1.msra.mxu0 0.0
        %313 = vmatprep.subr.mxu0 0.0
        %314 = vmatpush1.msra.mxu0 0.0
        %315 = vmatprep.subr.mxu0 0.0
        %316 = vmatpush1.msra.mxu0 0.0
        %317 = vmatprep.subr.mxu0 0.0
        %318 = vmatpush1.msra.mxu0 0.0
        %319 = vmatprep.subr.mxu0 0.0
        %320 = vmatpush1.msra.mxu0 0.0
        %321 = vmatprep.subr.mxu0 0.0
        %322 = vmatpush1.msra.mxu0 0.0
        %323 = vmatprep.subr.mxu0 0.0
        %324 = vmatpush1.msra.mxu0 0.0
        %325 = vmatprep.subr.mxu0 0.0
        %326 = vmatpush1.msra.mxu0 0.0
        %327 = vmatprep.mubr.f32.mxu0 0.0
        %328 = vmatmul.mubr.f32.gmra.mrb[0].mxu0 %v257
        %v329 = vpop.f32.mrb[0].mxu0
        %v330 = vadd.f32 %v248, %v329
        %v331 = vpop.f32.mrb[0].mxu0
        %332 = vdwg.mxu0
        %v333 = vmax.f32 %v330, 0.0
        %v334 = vld [vmem:[%s3] sm:$0x3]
        %v335 = vld [vmem:[%s4] sm:$0x1]
        %vm336 = vcmask 15360
        %v338 = vsel %vm336, %v333, 0
        %vm340 = vcmask 1041408
        %v342 = vsel %vm340, %v334, 0
        %344 = vmatprep.subr.mxu0 0.0
        %345 = vmatpush1.msra.mxu0 %v342
        %346 = vmatprep.subr.mxu0 0.0
        %347 = vmatpush1.msra.mxu0 0.0
        %348 = vmatprep.subr.mxu0 0.0
        %349 = vmatpush1.msra.mxu0 0.0
        %350 = vmatprep.subr.mxu0 0.0
        %351 = vmatpush1.msra.mxu0 0.0
        %352 = vmatprep.subr.mxu0 0.0
        %353 = vmatpush1.msra.mxu0 0.0
        %354 = vmatprep.subr.mxu0 0.0
        %355 = vmatpush1.msra.mxu0 0.0
        %356 = vmatprep.subr.mxu0 0.0
        %357 = vmatpush1.msra.mxu0 0.0
        %358 = vmatprep.subr.mxu0 0.0
        %359 = vmatpush1.msra.mxu0 0.0
        %360 = vmatprep.subr.mxu0 0.0
        %361 = vmatpush1.msra.mxu0 0.0
        %362 = vmatprep.subr.mxu0 0.0
        %363 = vmatpush1.msra.mxu0 0.0
        %364 = vmatprep.subr.mxu0 0.0
        %365 = vmatpush1.msra.mxu0 0.0
        %366 = vmatprep.subr.mxu0 0.0
        %367 = vmatpush1.msra.mxu0 0.0
        %368 = vmatprep.subr.mxu0 0.0
        %369 = vmatpush1.msra.mxu0 0.0
        %370 = vmatprep.subr.mxu0 0.0
        %371 = vmatpush1.msra.mxu0 0.0
        %372 = vmatprep.subr.mxu0 0.0
        %373 = vmatpush1.msra.mxu0 0.0
        %374 = vmatprep.subr.mxu0 0.0
        %375 = vmatpush1.msra.mxu0 0.0
        %376 = vmatprep.subr.mxu0 0.0
        %377 = vmatpush1.msra.mxu0 0.0
        %378 = vmatprep.subr.mxu0 0.0
        %379 = vmatpush1.msra.mxu0 0.0
        %380 = vmatprep.subr.mxu0 0.0
        %381 = vmatpush1.msra.mxu0 0.0
        %382 = vmatprep.subr.mxu0 0.0
        %383 = vmatpush1.msra.mxu0 0.0
        %384 = vmatprep.subr.mxu0 0.0
        %385 = vmatpush1.msra.mxu0 0.0
        %386 = vmatprep.subr.mxu0 0.0
        %387 = vmatpush1.msra.mxu0 0.0
        %388 = vmatprep.subr.mxu0 0.0
        %389 = vmatpush1.msra.mxu0 0.0
        %390 = vmatprep.subr.mxu0 0.0
        %391 = vmatpush1.msra.mxu0 0.0
        %392 = vmatprep.subr.mxu0 0.0
        %393 = vmatpush1.msra.mxu0 0.0
        %394 = vmatprep.subr.mxu0 0.0
        %395 = vmatpush1.msra.mxu0 0.0
        %396 = vmatprep.subr.mxu0 0.0
        %397 = vmatpush1.msra.mxu0 0.0
        %398 = vmatprep.subr.mxu0 0.0
        %399 = vmatpush1.msra.mxu0 0.0
        %400 = vmatprep.subr.mxu0 0.0
        %401 = vmatpush1.msra.mxu0 0.0
        %402 = vmatprep.subr.mxu0 0.0
        %403 = vmatpush1.msra.mxu0 0.0
        %404 = vmatprep.subr.mxu0 0.0
        %405 = vmatpush1.msra.mxu0 0.0
        %406 = vmatprep.subr.mxu0 0.0
        %407 = vmatpush1.msra.mxu0 0.0
        %408 = vmatprep.mubr.f32.mxu0 0.0
        %409 = vmatmul.mubr.f32.gmra.mrb[0].mxu0 %v338
        %v410 = vpop.f32.mrb[0].mxu0
        %v411 = vadd.f32 %v335, %v410
        %v412 = vpop.f32.mrb[0].mxu0
        %413 = vdwg.mxu0
        %v414 = vxor.u32 %v411, 2147483648
        %v415 = vmul.f32 %v414, 1.442695
        %v416 = vpow.pop %v415
        %v417 = vadd.f32 %v416, 1.0
        %v418 = vrcp.pop %v417
        %v419 = vmul.f32 1.0, %v418
        %v420 = vlaneseq
        %v421 = vshrl.u32 %v420, 7
        %v422 = vsub.s32 0, %v421
        %v423 = vrot.slane %v419, %v422
        %425 = vbcast.lane.b32.xlu0 %v423, 256
        %v426 = vpop.permute.xlu0 %425
        %v427 = vmul.f32 %v240, %v426
        %428 = vst.msk [vmem:[%s239] sm:$0xf] %vm241, %v427
        %s429 = sand.u32 %s140, 1
        %s430 = scalar_lea.sflag [#allocation4], %s429
        %s431 = sand.u32 %s140, 1
        %s432 = smul.addr %s431, 4
        %s433 = scalar_lea.vmem [#allocation5], %s432
        // Predicated region
        $region45: #{tpu_custom_call.1} parent=39 // pred_check
          %p434 = pneg %p150
        $region46: #{tpu_custom_call.1} parent=39 // pred_check_branch
          %436 = sbr.rel (%p434) target = $region48
        $region47: #{tpu_custom_call.1} parent=39 // pred_region
          %s438 = ssub.s32 64, 64
          %439 = vsyncadd %s430, %s438
          %s440 = smul.addr %s22, 64
          %s441 = scalar_lea.hbm %s5, %s440
          %s443 = sshll.u32 %s433, 4
          %s444 = int_to_ptr.vmem [resolvable:$true] %s443
          %446 = dma.vmem_to_hbm [thread:$0]  %s444, 64, %s441, %s430
        $region48: #{tpu_custom_call.1} parent=39 // pred_fallthru
          _
      $region40: #{tpu_custom_call.1} parent=5 // pred_fallthru
        _
      %p447 = scmp.le.s32.totalorder 2, %s17
      // Predicated region
      $region49: #{tpu_custom_call.1} parent=5 // pred_check
        %p448 = pneg %p447
      $region50: #{tpu_custom_call.1} parent=5 // pred_check_branch
        %450 = sbr.rel (%p448) target = $region52
      $region51: #{tpu_custom_call.1} parent=5 // pred_region
        %s451 = ssub.s32 %s17, 2
        // Predicated region
        $region53: #{tpu_custom_call.1} parent=51 // pred_check
          %p452 = pneg %p156
        $region54: #{tpu_custom_call.1} parent=51 // pred_check_branch
          %454 = sbr.rel (%p452) target = $region56
        $region55: #{tpu_custom_call.1} parent=51 // pred_region
          %s455 = sand.u32 %s141, 1
          %s456 = scalar_lea.sflag [#allocation4], %s455
          %s457 = sand.u32 %s141, 1
          %s458 = smul.addr %s457, 4
          %s459 = scalar_lea.vmem [#allocation5], %s458
          %460 = dma.done %s456, 64
        $region56: #{tpu_custom_call.1} parent=51 // pred_fallthru
          _
      $region52: #{tpu_custom_call.1} parent=5 // pred_fallthru
        _
    $region6: #{tpu_custom_call.1} parent=1 // loop_footer
      %s21 = sadd.s32 1, %s17
    $region7: #{tpu_custom_call.1} parent=1 // loop_footer_branch
      %16 = sbr.rel target = $region3
    $region8: #{tpu_custom_call.1} parent=1 // loop_exit
      _
    %461 = vsyncpa [#allocation3], 1
    %s462 = scalar_lea.sflag [#allocation3], 1
    %463 = vsyncpa %s462, 1
    %464 = vsyncpa [#allocation4], 1
    %s465 = scalar_lea.sflag [#allocation4], 1
    %466 = vsyncpa %s465, 1

</llo_original>
